<compile_context>
chip_gen: v7x
topology: tpu7x:2x2x1
jax: 0.10.0
libtpu: 0.0.40
codegen_flags: <defaults>
</compile_context>

<pallas_src>
import jax
import jax.numpy as jnp
from jax.experimental import pallas as pl
from jax.experimental.pallas import tpu as pltpu

_LANE = 128


def _elu(x):
    # ELU(alpha=1): x for x > 0, exp(x) - 1 otherwise.  The clamp keeps the
    # unselected branch finite for large positive x (no inf/NaN anywhere).
    return jnp.where(x > 0, x, jnp.exp(jnp.minimum(x, 0.0)) - 1.0)


def _sigmoid(x):
    # Numerically stable sigmoid; tanh is a single EUP transcendental.
    return 0.5 * (jnp.tanh(0.5 * x) + 1.0)


def generator_kernel(x_ref, w1_ref, b1_ref, w2_ref, b2_ref, w3_ref, b3_ref, o_ref):
    # Everything is transposed: features on sublanes, batch on lanes.
    #   x_ref : (in, tb)    w{n}_ref : (out_f, in_f)    b{n}_ref : (out_f, 1)
    h = jnp.dot(w1_ref[...], x_ref[...], preferred_element_type=jnp.float32)
    h = _elu(h + b1_ref[...])                              # (hidden, tb)
    h = jnp.dot(w2_ref[...], h, preferred_element_type=jnp.float32)
    h = _sigmoid(h + b2_ref[...])                          # (hidden, tb)
    h = jnp.dot(w3_ref[...], h, preferred_element_type=jnp.float32)
    o_ref[...] = _elu(h + b3_ref[...])                     # (out, tb) - all lanes real


def generator_forward(x, params, *, tile_b=4096):
    """x: [B, input_size] float32. params: dict of W1,b1,W2,b2,W3,b3 ([in,out] layout)."""
    w1, b1 = params["w1"], params["b1"]
    w2, b2 = params["w2"], params["b2"]
    w3, b3 = params["w3"], params["b3"]

    B, in_size = x.shape
    out_size = w3.shape[1]

    # Transposed operands (all tiny single passes / resident constants).
    xt = x.T                                   # (in, B)
    w1t, w2t, w3t = w1.T, w2.T, w3.T           # (out_features, in_features)
    b1c = b1.reshape(-1, 1)                    # (hidden, 1)
    b2c = b2.reshape(-1, 1)
    b3c = b3.reshape(-1, 1)                    # (out, 1)

    # Batch tile: lane-dense multiple of 128; force >= 2 grid steps when B > 128
    # so ("parallel",) can shard the batch across both v7x TensorCores.
    tile_b = max(_LANE, (tile_b // _LANE) * _LANE)
    if B <= _LANE:
        tb = B                                 # single block (== full array dim)
    else:
        half = (B // 2) // _LANE * _LANE       # largest 128-multiple <= B/2
        tb = max(_LANE, min(tile_b, half))
    grid = (pl.cdiv(B, tb),)                   # ragged last tile handled by Pallas

    def resident(a):
        # Full-array block, constant index -> fetched once, stays in VMEM.
        return pl.BlockSpec(a.shape, lambda i: (0, 0))

    out_t = pl.pallas_call(
        generator_kernel,
        out_shape=jax.ShapeDtypeStruct((out_size, B), jnp.float32),
        grid=grid,
        in_specs=[
            pl.BlockSpec((in_size, tb), lambda i: (0, i)),   # x^T tiled over batch lanes
            resident(w1t), resident(b1c),
            resident(w2t), resident(b2c),
            resident(w3t), resident(b3c),
        ],
        out_specs=pl.BlockSpec((out_size, tb), lambda i: (0, i)),
        compiler_params=pltpu.CompilerParams(
            dimension_semantics=("parallel",),
        ),
    )(xt, w1t, b1c, w2t, b2c, w3t, b3c)

    # Consumers that can work in (out, B) layout should use out_t directly; this
    # transpose back to PyTorch's (B, out) is a single cheap pass over 4*B floats.
    return out_t.T


def init_params(key, input_size, hidden_size, output_size):
    """Deterministic synthetic weights matching nn.Linear shapes (stored as [in, out])."""
    ks = jax.random.split(key, 6)

    def lin(kw, kb, fan_in, fan_out):
        bound = 1.0 / jnp.sqrt(fan_in)
        w = jax.random.uniform(kw, (fan_in, fan_out), jnp.float32, -bound, bound)
        b = jax.random.uniform(kb, (1, fan_out), jnp.float32, -bound, bound)
        return w, b

    w1, b1 = lin(ks[0], ks[1], input_size, hidden_size)
    w2, b2 = lin(ks[2], ks[3], hidden_size, hidden_size)
    w3, b3 = lin(ks[4], ks[5], hidden_size, output_size)
    return {"w1": w1, "b1": b1, "w2": w2, "b2": b2, "w3": w3, "b3": b3}


def _reference(x, p):
    dot = lambda a, b: jnp.dot(a, b, precision=jax.lax.Precision.HIGHEST)
    h = jax.nn.elu(dot(x, p["w1"]) + p["b1"])
    h = jax.nn.sigmoid(dot(h, p["w2"]) + p["b2"])
    return jax.nn.elu(dot(h, p["w3"]) + p["b3"])


if __name__ == "__main__":
    input_size, hidden_size, output_size = 4, 32, 4

    key = jax.random.PRNGKey(0)
    kx, kp = jax.random.split(key)
    params = init_params(kp, input_size, hidden_size, output_size)

    # Small batch: single-tile path.
    x_small = jax.random.normal(kx, (8, input_size), jnp.float32)
    out_small = jax.block_until_ready(generator_forward(x_small, params))
    ref_small = _reference(x_small, params)
    assert out_small.shape == (8, output_size)
    # f32 kernel vs f32 reference; slack covers MXU precision-pass differences.
    assert jnp.allclose(out_small, ref_small, atol=1e-2, rtol=1e-2), "mismatch (small batch)"

    # Larger batch: exercises the 2-step pipelined/parallel grid path.
    x_big = jax.random.normal(kx, (512, input_size), jnp.float32)
    out_big = jax.block_until_ready(generator_forward(x_big, params, tile_b=256))
    ref_big = _reference(x_big, params)
    assert out_big.shape == (512, output_size)
    assert jnp.allclose(out_big, ref_big, atol=1e-2, rtol=1e-2), "mismatch (multi-tile batch)"

    print("KERNEL_OK")
</pallas_src>

<mosaic_0001>
module attributes {stable_mosaic.version = 11 : i64} {
  func.func @generator_kernel(%arg0: i32, %arg1: memref<4x8xf32, #tpu.memory_space<vmem>>, %arg2: memref<32x4xf32, #tpu.memory_space<vmem>>, %arg3: memref<32x1xf32, #tpu.memory_space<vmem>>, %arg4: memref<32x32xf32, #tpu.memory_space<vmem>>, %arg5: memref<32x1xf32, #tpu.memory_space<vmem>>, %arg6: memref<4x32xf32, #tpu.memory_space<vmem>>, %arg7: memref<4x1xf32, #tpu.memory_space<vmem>>, %arg8: memref<4x8xf32, #tpu.memory_space<vmem>>) attributes {dimension_semantics = [#tpu.dimension_semantics<parallel>], iteration_bounds = array<i64: 1>, scalar_prefetch = 0 : i64, scratch_operands = 0 : i64, tpu.core_type = #tpu.core_type<tc>, window_params = [{transform_indices = @transform_0, window_bounds = array<i64: 4, 8>}, {pipeline_mode = #tpu.pipeline_mode<synchronous>, transform_indices = @transform_1, window_bounds = array<i64: 32, 4>}, {pipeline_mode = #tpu.pipeline_mode<synchronous>, transform_indices = @transform_2, window_bounds = array<i64: 32, 1>}, {pipeline_mode = #tpu.pipeline_mode<synchronous>, transform_indices = @transform_3, window_bounds = array<i64: 32, 32>}, {pipeline_mode = #tpu.pipeline_mode<synchronous>, transform_indices = @transform_4, window_bounds = array<i64: 32, 1>}, {pipeline_mode = #tpu.pipeline_mode<synchronous>, transform_indices = @transform_5, window_bounds = array<i64: 4, 32>}, {pipeline_mode = #tpu.pipeline_mode<synchronous>, transform_indices = @transform_6, window_bounds = array<i64: 4, 1>}, {transform_indices = @transform_7, window_bounds = array<i64: 4, 8>}]} {
    %c0 = arith.constant 0 : index
    %c0_0 = arith.constant 0 : index
    %0 = vector.load %arg2[%c0, %c0_0] : memref<32x4xf32, #tpu.memory_space<vmem>>, vector<32x4xf32>
    %c0_1 = arith.constant 0 : index
    %c0_2 = arith.constant 0 : index
    %1 = vector.load %arg1[%c0_1, %c0_2] : memref<4x8xf32, #tpu.memory_space<vmem>>, vector<4x8xf32>
    %cst = arith.constant dense<0.000000e+00> : vector<32x8xf32>
    %2 = tpu.matmul %0, %1, %cst {dimension_numbers = #tpu.dot_dimension_numbers<[1], [0], [0], [1], [0, 0, 1, 1], [], []>} : vector<32x4xf32>, vector<4x8xf32>, vector<32x8xf32> -> vector<32x8xf32>
    %c0_3 = arith.constant 0 : index
    %c0_4 = arith.constant 0 : index
    %3 = vector.load %arg3[%c0_3, %c0_4] : memref<32x1xf32, #tpu.memory_space<vmem>>, vector<32x1xf32>
    %4 = vector.broadcast %3 : vector<32x1xf32> to vector<32x8xf32>
    %5 = arith.addf %2, %4 : vector<32x8xf32>
    %cst_5 = arith.constant 0.000000e+00 : f32
    %6 = vector.broadcast %cst_5 : f32 to vector<32x8xf32>
    %7 = arith.cmpf ogt, %5, %6 : vector<32x8xf32>
    %cst_6 = arith.constant 0.000000e+00 : f32
    %8 = vector.broadcast %cst_6 : f32 to vector<32x8xf32>
    %9 = arith.minimumf %5, %8 : vector<32x8xf32>
    %10 = math.exp %9 : vector<32x8xf32>
    %cst_7 = arith.constant 1.000000e+00 : f32
    %11 = vector.broadcast %cst_7 : f32 to vector<32x8xf32>
    %12 = arith.subf %10, %11 : vector<32x8xf32>
    %13 = arith.select %7, %5, %12 : vector<32x8xi1>, vector<32x8xf32>
    %c0_8 = arith.constant 0 : index
    %c0_9 = arith.constant 0 : index
    %14 = vector.load %arg4[%c0_8, %c0_9] : memref<32x32xf32, #tpu.memory_space<vmem>>, vector<32x32xf32>
    %cst_10 = arith.constant dense<0.000000e+00> : vector<32x8xf32>
    %15 = tpu.matmul %14, %13, %cst_10 {dimension_numbers = #tpu.dot_dimension_numbers<[1], [0], [0], [1], [0, 0, 1, 1], [], []>} : vector<32x32xf32>, vector<32x8xf32>, vector<32x8xf32> -> vector<32x8xf32>
    %c0_11 = arith.constant 0 : index
    %c0_12 = arith.constant 0 : index
    %16 = vector.load %arg5[%c0_11, %c0_12] : memref<32x1xf32, #tpu.memory_space<vmem>>, vector<32x1xf32>
    %17 = vector.broadcast %16 : vector<32x1xf32> to vector<32x8xf32>
    %18 = arith.addf %15, %17 : vector<32x8xf32>
    %cst_13 = arith.constant 5.000000e-01 : f32
    %19 = vector.broadcast %cst_13 : f32 to vector<32x8xf32>
    %20 = arith.mulf %19, %18 : vector<32x8xf32>
    %21 = math.tanh %20 : vector<32x8xf32>
    %cst_14 = arith.constant 1.000000e+00 : f32
    %22 = vector.broadcast %cst_14 : f32 to vector<32x8xf32>
    %23 = arith.addf %21, %22 : vector<32x8xf32>
    %cst_15 = arith.constant 5.000000e-01 : f32
    %24 = vector.broadcast %cst_15 : f32 to vector<32x8xf32>
    %25 = arith.mulf %24, %23 : vector<32x8xf32>
    %c0_16 = arith.constant 0 : index
    %c0_17 = arith.constant 0 : index
    %26 = vector.load %arg6[%c0_16, %c0_17] : memref<4x32xf32, #tpu.memory_space<vmem>>, vector<4x32xf32>
    %cst_18 = arith.constant dense<0.000000e+00> : vector<4x8xf32>
    %27 = tpu.matmul %26, %25, %cst_18 {dimension_numbers = #tpu.dot_dimension_numbers<[1], [0], [0], [1], [0, 0, 1, 1], [], []>} : vector<4x32xf32>, vector<32x8xf32>, vector<4x8xf32> -> vector<4x8xf32>
    %c0_19 = arith.constant 0 : index
    %c0_20 = arith.constant 0 : index
    %28 = vector.load %arg7[%c0_19, %c0_20] : memref<4x1xf32, #tpu.memory_space<vmem>>, vector<4x1xf32>
    %29 = vector.broadcast %28 : vector<4x1xf32> to vector<4x8xf32>
    %30 = arith.addf %27, %29 : vector<4x8xf32>
    %cst_21 = arith.constant 0.000000e+00 : f32
    %31 = vector.broadcast %cst_21 : f32 to vector<4x8xf32>
    %32 = arith.cmpf ogt, %30, %31 : vector<4x8xf32>
    %cst_22 = arith.constant 0.000000e+00 : f32
    %33 = vector.broadcast %cst_22 : f32 to vector<4x8xf32>
    %34 = arith.minimumf %30, %33 : vector<4x8xf32>
    %35 = math.exp %34 : vector<4x8xf32>
    %cst_23 = arith.constant 1.000000e+00 : f32
    %36 = vector.broadcast %cst_23 : f32 to vector<4x8xf32>
    %37 = arith.subf %35, %36 : vector<4x8xf32>
    %38 = arith.select %32, %30, %37 : vector<4x8xi1>, vector<4x8xf32>
    %c0_24 = arith.constant 0 : index
    %c0_25 = arith.constant 0 : index
    %39 = vector.load %arg8[%c0_24, %c0_25] : memref<4x8xf32, #tpu.memory_space<vmem>>, vector<4x8xf32>
    tpu.vector_store %arg8[%c0_24, %c0_25], %38 {strides = array<i32>} : memref<4x8xf32, #tpu.memory_space<vmem>>, vector<4x8xf32>,
    return
  }
  func.func @transform_0(%arg0: i32) -> (i32, i32) {
    %c0_i32 = arith.constant 0 : i32
    %c0_i32_0 = arith.constant 0 : i32
    return %c0_i32, %arg0 : i32, i32
  }
  func.func @transform_1(%arg0: i32) -> (i32, i32) {
    %c0_i32 = arith.constant 0 : i32
    %c0_i32_0 = arith.constant 0 : i32
    %c0_i32_1 = arith.constant 0 : i32
    return %c0_i32, %c0_i32_0 : i32, i32
  }
  func.func @transform_2(%arg0: i32) -> (i32, i32) {
    %c0_i32 = arith.constant 0 : i32
    %c0_i32_0 = arith.constant 0 : i32
    %c0_i32_1 = arith.constant 0 : i32
    return %c0_i32, %c0_i32_0 : i32, i32
  }
  func.func @transform_3(%arg0: i32) -> (i32, i32) {
    %c0_i32 = arith.constant 0 : i32
    %c0_i32_0 = arith.constant 0 : i32
    %c0_i32_1 = arith.constant 0 : i32
    return %c0_i32, %c0_i32_0 : i32, i32
  }
  func.func @transform_4(%arg0: i32) -> (i32, i32) {
    %c0_i32 = arith.constant 0 : i32
    %c0_i32_0 = arith.constant 0 : i32
    %c0_i32_1 = arith.constant 0 : i32
    return %c0_i32, %c0_i32_0 : i32, i32
  }
  func.func @transform_5(%arg0: i32) -> (i32, i32) {
    %c0_i32 = arith.constant 0 : i32
    %c0_i32_0 = arith.constant 0 : i32
    %c0_i32_1 = arith.constant 0 : i32
    return %c0_i32, %c0_i32_0 : i32, i32
  }
  func.func @transform_6(%arg0: i32) -> (i32, i32) {
    %c0_i32 = arith.constant 0 : i32
    %c0_i32_0 = arith.constant 0 : i32
    %c0_i32_1 = arith.constant 0 : i32
    return %c0_i32, %c0_i32_0 : i32, i32
  }
  func.func @transform_7(%arg0: i32) -> (i32, i32) {
    %c0_i32 = arith.constant 0 : i32
    %c0_i32_0 = arith.constant 0 : i32
    return %c0_i32, %arg0 : i32, i32
  }
}

</mosaic_0001>

<llo_original>
// kernel: tpu_custom_call.1
$region0: #{tpu_custom_call.1}
  #allocation0 [shape = 'u32[]', space=smem, size = 0x4, offset = 0x4, fixed_abs, tag = 'smem constant byte address 0x4 - core index']
  #allocation1 [shape = 'u32[144,128]{1,0:T(1,128)}', space=vmem, size = 0x12000, scoped, tag = 'internal scratch']
  %s0 = inlined_call_operand.vmem [shape: f32[4,8], index: 0, kind: input, shape index: {}]
  %s1 = inlined_call_operand.vmem [shape: f32[32,4], index: 1, kind: input, shape index: {}]
  %s2 = inlined_call_operand.vmem [shape: f32[32,1], index: 2, kind: input, shape index: {}]
  %s3 = inlined_call_operand.vmem [shape: f32[32,32], index: 3, kind: input, shape index: {}]
  %s4 = inlined_call_operand.vmem [shape: f32[32,1], index: 4, kind: input, shape index: {}]
  %s5 = inlined_call_operand.vmem [shape: f32[4,32], index: 5, kind: input, shape index: {}]
  %s6 = inlined_call_operand.vmem [shape: f32[4,1], index: 6, kind: input, shape index: {}]
  %s7 = inlined_call_operand.hbm [shape: f32[4,8], index: 7, kind: output, shape index: {}]
  %s8 = sld [smem:[#allocation0]]
  $region38: #{tpu_custom_call.1} parent=0
    _
  %s10 = ssub.s32 1, %s8
  %s11 = scalar_select 0, %s10, %s8
  $region1: #{tpu_custom_call.1} parent=0
    #allocation2 [shape = 'u8[2048]{0}', space=vmem, size = 0x800, scoped, tag = 'output window, operand 0, single buffered']
    #allocation3 [shape = 's32[1]{0}', space=sflag, size = 0x4, scoped, tag = 'scoped memory for tpu_custom_call.1']
    %12 = vsyncpa [#allocation3], 0
    // Predicated region
    $region2: #{tpu_custom_call.1} parent=1 // pred_check
      _
    $region3: #{tpu_custom_call.1} parent=1 // pred_check_branch
      %14 = sbr.rel (0) target = $region5
    $region4: #{tpu_custom_call.1} parent=1 // pred_region
      _
    $region5: #{tpu_custom_call.1} parent=1 // pred_fallthru
      _
    // Predicated region
    $region6: #{tpu_custom_call.1} parent=1 // pred_check
      _
    $region7: #{tpu_custom_call.1} parent=1 // pred_check_branch
      %16 = sbr.rel (0) target = $region9
    $region8: #{tpu_custom_call.1} parent=1 // pred_region
      _
    $region9: #{tpu_custom_call.1} parent=1 // pred_fallthru
      _
    // Predicated region
    $region10: #{tpu_custom_call.1} parent=1 // pred_check
      _
    $region11: #{tpu_custom_call.1} parent=1 // pred_check_branch
      %18 = sbr.rel (0) target = $region13
    $region12: #{tpu_custom_call.1} parent=1 // pred_region
      _
    $region13: #{tpu_custom_call.1} parent=1 // pred_fallthru
      _
    // Predicated region
    $region14: #{tpu_custom_call.1} parent=1 // pred_check
      _
    $region15: #{tpu_custom_call.1} parent=1 // pred_check_branch
      %20 = sbr.rel (0) target = $region17
    $region16: #{tpu_custom_call.1} parent=1 // pred_region
      _
    $region17: #{tpu_custom_call.1} parent=1 // pred_fallthru
      _
    // Predicated region
    $region18: #{tpu_custom_call.1} parent=1 // pred_check
      _
    $region19: #{tpu_custom_call.1} parent=1 // pred_check_branch
      %22 = sbr.rel (0) target = $region21
    $region20: #{tpu_custom_call.1} parent=1 // pred_region
      _
    $region21: #{tpu_custom_call.1} parent=1 // pred_fallthru
      _
    // Predicated region
    $region22: #{tpu_custom_call.1} parent=1 // pred_check
      _
    $region23: #{tpu_custom_call.1} parent=1 // pred_check_branch
      %24 = sbr.rel (0) target = $region25
    $region24: #{tpu_custom_call.1} parent=1 // pred_region
      _
    $region25: #{tpu_custom_call.1} parent=1 // pred_fallthru
      _
    // Predicated region
    $region26: #{tpu_custom_call.1} parent=1 // pred_check
      _
    $region27: #{tpu_custom_call.1} parent=1 // pred_check_branch
      %26 = sbr.rel (0) target = $region29
    $region28: #{tpu_custom_call.1} parent=1 // pred_region
      _
    $region29: #{tpu_custom_call.1} parent=1 // pred_fallthru
      _
    %v27 = vld [vmem:[%s1] sm:$0xff]
    %v28 = vld [vmem:[%s1 + $0x8] sm:$0xff]
    %v29 = vld [vmem:[%s1 + $0x10] sm:$0xff]
    %v30 = vld [vmem:[%s1 + $0x18] sm:$0xff]
    %v31 = vld [vmem:[%s0] sm:$0xf]
    %v32 = vld [vmem:[%s2] sm:$0xff]
    %v33 = vld [vmem:[%s2 + $0x8] sm:$0xff]
    %v34 = vld [vmem:[%s2 + $0x10] sm:$0xff]
    %v35 = vld [vmem:[%s2 + $0x18] sm:$0xff]
    %37 = vset.pattern.permute.xlu0 0
    %38 = vperm.xlu0 %37, %v32
    %v39 = vpop.permute.xlu0 %38
    %42 = vset.pattern.permute.xlu0 0
    %43 = vperm.xlu0 %42, %v33
    %v44 = vpop.permute.xlu0 %43
    %47 = vset.pattern.permute.xlu0 0
    %48 = vperm.xlu0 %47, %v34
    %v49 = vpop.permute.xlu0 %48
    %52 = vset.pattern.permute.xlu0 0
    %53 = vperm.xlu0 %52, %v35
    %v54 = vpop.permute.xlu0 %53
    %vm56 = vcmask 31744
    %v58 = vsel %vm56, %v27, 0
    %v61 = vsel %vm56, %v28, 0
    %v64 = vsel %vm56, %v29, 0
    %v67 = vsel %vm56, %v30, 0
    %vm69 = vcmask 1043456
    %v71 = vsel %vm69, %v31, 0
    %73 = vmatprep.subr.mxu0 0.0
    %74 = vmatpush1.msra.mxu0 %v71
    %75 = vmatprep.subr.mxu0 0.0
    %76 = vmatpush1.msra.mxu0 0.0
    %77 = vmatprep.subr.mxu0 0.0
    %78 = vmatpush1.msra.mxu0 0.0
    %79 = vmatprep.subr.mxu0 0.0
    %80 = vmatpush1.msra.mxu0 0.0
    %81 = vmatprep.subr.mxu0 0.0
    %82 = vmatpush1.msra.mxu0 0.0
    %83 = vmatprep.subr.mxu0 0.0
    %84 = vmatpush1.msra.mxu0 0.0
    %85 = vmatprep.subr.mxu0 0.0
    %86 = vmatpush1.msra.mxu0 0.0
    %87 = vmatprep.subr.mxu0 0.0
    %88 = vmatpush1.msra.mxu0 0.0
    %89 = vmatprep.subr.mxu0 0.0
    %90 = vmatpush1.msra.mxu0 0.0
    %91 = vmatprep.subr.mxu0 0.0
    %92 = vmatpush1.msra.mxu0 0.0
    %93 = vmatprep.subr.mxu0 0.0
    %94 = vmatpush1.msra.mxu0 0.0
    %95 = vmatprep.subr.mxu0 0.0
    %96 = vmatpush1.msra.mxu0 0.0
    %97 = vmatprep.subr.mxu0 0.0
    %98 = vmatpush1.msra.mxu0 0.0
    %99 = vmatprep.subr.mxu0 0.0
    %100 = vmatpush1.msra.mxu0 0.0
    %101 = vmatprep.subr.mxu0 0.0
    %102 = vmatpush1.msra.mxu0 0.0
    %103 = vmatprep.subr.mxu0 0.0
    %104 = vmatpush1.msra.mxu0 0.0
    %105 = vmatprep.subr.mxu0 0.0
    %106 = vmatpush1.msra.mxu0 0.0
    %107 = vmatprep.subr.mxu0 0.0
    %108 = vmatpush1.msra.mxu0 0.0
    %109 = vmatprep.subr.mxu0 0.0
    %110 = vmatpush1.msra.mxu0 0.0
    %111 = vmatprep.subr.mxu0 0.0
    %112 = vmatpush1.msra.mxu0 0.0
    %113 = vmatprep.subr.mxu0 0.0
    %114 = vmatpush1.msra.mxu0 0.0
    %115 = vmatprep.subr.mxu0 0.0
    %116 = vmatpush1.msra.mxu0 0.0
    %117 = vmatprep.subr.mxu0 0.0
    %118 = vmatpush1.msra.mxu0 0.0
    %119 = vmatprep.subr.mxu0 0.0
    %120 = vmatpush1.msra.mxu0 0.0
    %121 = vmatprep.subr.mxu0 0.0
    %122 = vmatpush1.msra.mxu0 0.0
    %123 = vmatprep.subr.mxu0 0.0
    %124 = vmatpush1.msra.mxu0 0.0
    %125 = vmatprep.subr.mxu0 0.0
    %126 = vmatpush1.msra.mxu0 0.0
    %127 = vmatprep.subr.mxu0 0.0
    %128 = vmatpush1.msra.mxu0 0.0
    %129 = vmatprep.subr.mxu0 0.0
    %130 = vmatpush1.msra.mxu0 0.0
    %131 = vmatprep.subr.mxu0 0.0
    %132 = vmatpush1.msra.mxu0 0.0
    %133 = vmatprep.subr.mxu0 0.0
    %134 = vmatpush1.msra.mxu0 0.0
    %135 = vmatprep.subr.mxu0 0.0
    %136 = vmatpush1.msra.mxu0 0.0
    %137 = vmatprep.mubr.f32.mxu0 0.0
    %138 = vmatmul.mubr.f32.gmra.mrb[0].mxu0 %v58
    %v139 = vpop.f32.mrb[0].mxu0
    %v140 = vadd.f32 %v39, %v139
    %v141 = vpop.f32.mrb[0].mxu0
    %142 = vmatprep.mubr.f32.mxu0 0.0
    %143 = vmatmul.mubr.f32.gmra.mrb[0].mxu0 %v61
    %v144 = vpop.f32.mrb[0].mxu0
    %v145 = vadd.f32 %v44, %v144
    %v146 = vpop.f32.mrb[0].mxu0
    %147 = vmatprep.mubr.f32.mxu0 0.0
    %148 = vmatmul.mubr.f32.gmra.mrb[0].mxu0 %v64
    %v149 = vpop.f32.mrb[0].mxu0
    %v150 = vadd.f32 %v49, %v149
    %v151 = vpop.f32.mrb[0].mxu0
    %152 = vmatprep.mubr.f32.mxu0 0.0
    %153 = vmatmul.mubr.f32.gmra.mrb[0].mxu0 %v67
    %v154 = vpop.f32.mrb[0].mxu0
    %v155 = vadd.f32 %v54, %v154
    %v156 = vpop.f32.mrb[0].mxu0
    %157 = vdwg.mxu0
    %vm158 = vcmp.gt.f32.partialorder %v140, 0.0
    %vm159 = vcmp.gt.f32.partialorder %v145, 0.0
    %vm160 = vcmp.gt.f32.partialorder %v150, 0.0
    %vm161 = vcmp.gt.f32.partialorder %v155, 0.0
    %v162 = vmin.f32 %v140, 0.0
    %v163 = vmin.f32 %v145, 0.0
    %v164 = vmin.f32 %v150, 0.0
    %v165 = vmin.f32 %v155, 0.0
    %v166 = vmul.f32 %v162, 1.442695
    %v167 = vpow.pop %v166
    %v168 = vmul.f32 %v163, 1.442695
    %v169 = vpow.pop %v168
    %v170 = vmul.f32 %v164, 1.442695
    %v171 = vpow.pop %v170
    %v172 = vmul.f32 %v165, 1.442695
    %v173 = vpow.pop %v172
    %v174 = vsub.f32 %v167, 1.0
    %v175 = vsub.f32 %v169, 1.0
    %v176 = vsub.f32 %v171, 1.0
    %v177 = vsub.f32 %v173, 1.0
    %v178 = vsel %vm158, %v140, %v174
    %v179 = vsel %vm159, %v145, %v175
    %v180 = vsel %vm160, %v150, %v176
    %v181 = vsel %vm161, %v155, %v177
    %v182 = vld [vmem:[%s3] sm:$0xff]
    %v183 = vld [vmem:[%s3 + $0x8] sm:$0xff]
    %v184 = vld [vmem:[%s3 + $0x10] sm:$0xff]
    %v185 = vld [vmem:[%s3 + $0x18] sm:$0xff]
    %v186 = vld [vmem:[%s4] sm:$0xff]
    %v187 = vld [vmem:[%s4 + $0x8] sm:$0xff]
    %v188 = vld [vmem:[%s4 + $0x10] sm:$0xff]
    %v189 = vld [vmem:[%s4 + $0x18] sm:$0xff]
    %191 = vset.pattern.permute.xlu0 0
    %192 = vperm.xlu0 %191, %v186
    %v193 = vpop.permute.xlu0 %192
    %196 = vset.pattern.permute.xlu0 0
    %197 = vperm.xlu0 %196, %v187
    %v198 = vpop.permute.xlu0 %197
    %201 = vset.pattern.permute.xlu0 0
    %202 = vperm.xlu0 %201, %v188
    %v203 = vpop.permute.xlu0 %202
    %206 = vset.pattern.permute.xlu0 0
    %207 = vperm.xlu0 %206, %v189
    %v208 = vpop.permute.xlu0 %207
    %vm210 = vcmask 261120
    %v212 = vsel %vm210, %v182, 0
    %v215 = vsel %vm210, %v183, 0
    %v218 = vsel %vm210, %v184, 0
    %v221 = vsel %vm210, %v185, 0
    %223 = vmatprep.subr.mxu0 0.0
    %224 = vmatpush1.msra.mxu0 %v178
    %225 = vmatprep.subr.mxu0 0.0
    %226 = vmatpush1.msra.mxu0 %v179
    %227 = vmatprep.subr.mxu0 0.0
    %228 = vmatpush1.msra.mxu0 %v180
    %229 = vmatprep.subr.mxu0 0.0
    %230 = vmatpush1.msra.mxu0 %v181
    %231 = vmatprep.subr.mxu0 0.0
    %232 = vmatpush1.msra.mxu0 0.0
    %233 = vmatprep.subr.mxu0 0.0
    %234 = vmatpush1.msra.mxu0 0.0
    %235 = vmatprep.subr.mxu0 0.0
    %236 = vmatpush1.msra.mxu0 0.0
    %237 = vmatprep.subr.mxu0 0.0
    %238 = vmatpush1.msra.mxu0 0.0
    %239 = vmatprep.subr.mxu0 0.0
    %240 = vmatpush1.msra.mxu0 0.0
    %241 = vmatprep.subr.mxu0 0.0
    %242 = vmatpush1.msra.mxu0 0.0
    %243 = vmatprep.subr.mxu0 0.0
    %244 = vmatpush1.msra.mxu0 0.0
    %245 = vmatprep.subr.mxu0 0.0
    %246 = vmatpush1.msra.mxu0 0.0
    %247 = vmatprep.subr.mxu0 0.0
    %248 = vmatpush1.msra.mxu0 0.0
    %249 = vmatprep.subr.mxu0 0.0
    %250 = vmatpush1.msra.mxu0 0.0
    %251 = vmatprep.subr.mxu0 0.0
    %252 = vmatpush1.msra.mxu0 0.0
    %253 = vmatprep.subr.mxu0 0.0
    %254 = vmatpush1.msra.mxu0 0.0
    %255 = vmatprep.subr.mxu0 0.0
    %256 = vmatpush1.msra.mxu0 0.0
    %257 = vmatprep.subr.mxu0 0.0
    %258 = vmatpush1.msra.mxu0 0.0
    %259 = vmatprep.subr.mxu0 0.0
    %260 = vmatpush1.msra.mxu0 0.0
    %261 = vmatprep.subr.mxu0 0.0
    %262 = vmatpush1.msra.mxu0 0.0
    %263 = vmatprep.subr.mxu0 0.0
    %264 = vmatpush1.msra.mxu0 0.0
    %265 = vmatprep.subr.mxu0 0.0
    %266 = vmatpush1.msra.mxu0 0.0
    %267 = vmatprep.subr.mxu0 0.0
    %268 = vmatpush1.msra.mxu0 0.0
    %269 = vmatprep.subr.mxu0 0.0
    %270 = vmatpush1.msra.mxu0 0.0
    %271 = vmatprep.subr.mxu0 0.0
    %272 = vmatpush1.msra.mxu0 0.0
    %273 = vmatprep.subr.mxu0 0.0
    %274 = vmatpush1.msra.mxu0 0.0
    %275 = vmatprep.subr.mxu0 0.0
    %276 = vmatpush1.msra.mxu0 0.0
    %277 = vmatprep.subr.mxu0 0.0
    %278 = vmatpush1.msra.mxu0 0.0
    %279 = vmatprep.subr.mxu0 0.0
    %280 = vmatpush1.msra.mxu0 0.0
    %281 = vmatprep.subr.mxu0 0.0
    %282 = vmatpush1.msra.mxu0 0.0
    %283 = vmatprep.subr.mxu0 0.0
    %284 = vmatpush1.msra.mxu0 0.0
    %285 = vmatprep.subr.mxu0 0.0
    %286 = vmatpush1.msra.mxu0 0.0
    %287 = vmatprep.mubr.f32.mxu0 0.0
    %288 = vmatmul.mubr.f32.gmra.mrb[0].mxu0 %v212
    %v289 = vpop.f32.mrb[0].mxu0
    %v290 = vadd.f32 %v193, %v289
    %v291 = vpop.f32.mrb[0].mxu0
    %292 = vmatprep.mubr.f32.mxu0 0.0
    %293 = vmatmul.mubr.f32.gmra.mrb[0].mxu0 %v215
    %v294 = vpop.f32.mrb[0].mxu0
    %v295 = vadd.f32 %v198, %v294
    %v296 = vpop.f32.mrb[0].mxu0
    %297 = vmatprep.mubr.f32.mxu0 0.0
    %298 = vmatmul.mubr.f32.gmra.mrb[0].mxu0 %v218
    %v299 = vpop.f32.mrb[0].mxu0
    %v300 = vadd.f32 %v203, %v299
    %v301 = vpop.f32.mrb[0].mxu0
    %302 = vmatprep.mubr.f32.mxu0 0.0
    %303 = vmatmul.mubr.f32.gmra.mrb[0].mxu0 %v221
    %v304 = vpop.f32.mrb[0].mxu0
    %v305 = vadd.f32 %v208, %v304
    %v306 = vpop.f32.mrb[0].mxu0
    %307 = vdwg.mxu0
    %v308 = vmul.f32 %v290, 0.5
    %v309 = vmul.f32 %v295, 0.5
    %v310 = vmul.f32 %v300, 0.5
    %v311 = vmul.f32 %v305, 0.5
    %v312 = vtanh.pop %v308
    %v313 = vtanh.pop %v309
    %v314 = vtanh.pop %v310
    %v315 = vtanh.pop %v311
    %v316 = vadd.f32 %v312, 1.0
    %v317 = vadd.f32 %v313, 1.0
    %v318 = vadd.f32 %v314, 1.0
    %v319 = vadd.f32 %v315, 1.0
    %v320 = vmul.f32 %v316, 0.5
    %v321 = vmul.f32 %v317, 0.5
    %v322 = vmul.f32 %v318, 0.5
    %v323 = vmul.f32 %v319, 0.5
    %v324 = vld [vmem:[%s5] sm:$0xf]
    %v325 = vld [vmem:[%s6] sm:$0xf]
    %327 = vset.pattern.permute.xlu0 0
    %328 = vperm.xlu0 %327, %v325
    %v329 = vpop.permute.xlu0 %328
    %v332 = vsel %vm210, %v324, 0
    %334 = vmatprep.subr.mxu0 0.0
    %335 = vmatpush1.msra.mxu0 %v320
    %336 = vmatprep.subr.mxu0 0.0
    %337 = vmatpush1.msra.mxu0 %v321
    %338 = vmatprep.subr.mxu0 0.0
    %339 = vmatpush1.msra.mxu0 %v322
    %340 = vmatprep.subr.mxu0 0.0
    %341 = vmatpush1.msra.mxu0 %v323
    %342 = vmatprep.subr.mxu0 0.0
    %343 = vmatpush1.msra.mxu0 0.0
    %344 = vmatprep.subr.mxu0 0.0
    %345 = vmatpush1.msra.mxu0 0.0
    %346 = vmatprep.subr.mxu0 0.0
    %347 = vmatpush1.msra.mxu0 0.0
    %348 = vmatprep.subr.mxu0 0.0
    %349 = vmatpush1.msra.mxu0 0.0
    %350 = vmatprep.subr.mxu0 0.0
    %351 = vmatpush1.msra.mxu0 0.0
    %352 = vmatprep.subr.mxu0 0.0
    %353 = vmatpush1.msra.mxu0 0.0
    %354 = vmatprep.subr.mxu0 0.0
    %355 = vmatpush1.msra.mxu0 0.0
    %356 = vmatprep.subr.mxu0 0.0
    %357 = vmatpush1.msra.mxu0 0.0
    %358 = vmatprep.subr.mxu0 0.0
    %359 = vmatpush1.msra.mxu0 0.0
    %360 = vmatprep.subr.mxu0 0.0
    %361 = vmatpush1.msra.mxu0 0.0
    %362 = vmatprep.subr.mxu0 0.0
    %363 = vmatpush1.msra.mxu0 0.0
    %364 = vmatprep.subr.mxu0 0.0
    %365 = vmatpush1.msra.mxu0 0.0
    %366 = vmatprep.subr.mxu0 0.0
    %367 = vmatpush1.msra.mxu0 0.0
    %368 = vmatprep.subr.mxu0 0.0
    %369 = vmatpush1.msra.mxu0 0.0
    %370 = vmatprep.subr.mxu0 0.0
    %371 = vmatpush1.msra.mxu0 0.0
    %372 = vmatprep.subr.mxu0 0.0
    %373 = vmatpush1.msra.mxu0 0.0
    %374 = vmatprep.subr.mxu0 0.0
    %375 = vmatpush1.msra.mxu0 0.0
    %376 = vmatprep.subr.mxu0 0.0
    %377 = vmatpush1.msra.mxu0 0.0
    %378 = vmatprep.subr.mxu0 0.0
    %379 = vmatpush1.msra.mxu0 0.0
    %380 = vmatprep.subr.mxu0 0.0
    %381 = vmatpush1.msra.mxu0 0.0
    %382 = vmatprep.subr.mxu0 0.0
    %383 = vmatpush1.msra.mxu0 0.0
    %384 = vmatprep.subr.mxu0 0.0
    %385 = vmatpush1.msra.mxu0 0.0
    %386 = vmatprep.subr.mxu0 0.0
    %387 = vmatpush1.msra.mxu0 0.0
    %388 = vmatprep.subr.mxu0 0.0
    %389 = vmatpush1.msra.mxu0 0.0
    %390 = vmatprep.subr.mxu0 0.0
    %391 = vmatpush1.msra.mxu0 0.0
    %392 = vmatprep.subr.mxu0 0.0
    %393 = vmatpush1.msra.mxu0 0.0
    %394 = vmatprep.subr.mxu0 0.0
    %395 = vmatpush1.msra.mxu0 0.0
    %396 = vmatprep.subr.mxu0 0.0
    %397 = vmatpush1.msra.mxu0 0.0
    %398 = vmatprep.mubr.f32.mxu0 0.0
    %399 = vmatmul.mubr.f32.gmra.mrb[0].mxu0 %v332
    %v400 = vpop.f32.mrb[0].mxu0
    %v401 = vadd.f32 %v329, %v400
    %v402 = vpop.f32.mrb[0].mxu0
    %403 = vdwg.mxu0
    %vm404 = vcmp.gt.f32.partialorder %v401, 0.0
    %v405 = vmin.f32 %v401, 0.0
    %v406 = vmul.f32 %v405, 1.442695
    %v407 = vpow.pop %v406
    %v408 = vsub.f32 %v407, 1.0
    %v409 = vsel %vm404, %v401, %v408
    %vm410 = vcmask 60416
    %411 = vst.msk [vmem:[#allocation2] sm:$0xf] %vm410, %v409
    // Predicated region
    $region30: #{tpu_custom_call.1} parent=1 // pred_check
      _
    $region31: #{tpu_custom_call.1} parent=1 // pred_check_branch
      %413 = sbr.rel (0) target = $region33
    $region32: #{tpu_custom_call.1} parent=1 // pred_region
      %s415 = ssub.s32 64, 64
      %416 = vsyncadd [#allocation3], %s415
      %s418 = sshll.u32 [#allocation2], 4
      %s419 = int_to_ptr.vmem [resolvable:$true] %s418
      %421 = dma.vmem_to_hbm [thread:$0]  %s419, 64, %s7, [#allocation3]
    $region33: #{tpu_custom_call.1} parent=1 // pred_fallthru
      _
    // Predicated region
    $region34: #{tpu_custom_call.1} parent=1 // pred_check
      _
    $region35: #{tpu_custom_call.1} parent=1 // pred_check_branch
      %423 = sbr.rel (0) target = $region37
    $region36: #{tpu_custom_call.1} parent=1 // pred_region
      %424 = dma.done [#allocation3], 64
    $region37: #{tpu_custom_call.1} parent=1 // pred_fallthru
      _
    %425 = vsyncpa [#allocation3], 1

</llo_original>
